<compile_context>
chip_gen: v7x
topology: tpu7x:2x2x1
jax: 0.10.0
libtpu: 0.0.40
codegen_flags: <defaults>
</compile_context>

<pallas_src>
import functools

import jax
import jax.numpy as jnp
from jax.experimental import pallas as pl
from jax.experimental.pallas import tpu as pltpu

# TODO(synk): `self._epsilon` is assigned outside __init__ in the original
# codebase; it is fixed to a deterministic constant here.
EPSILON = 0.05

_LANE = 128


def _round_up(x: int, m: int) -> int:
    return ((x + m - 1) // m) * m


def _make_kernel(ninp: int, nout: int, eps: float, in_kernel_rng: bool):
    """Build the kernel body, specialized on static (ninp, nout)."""

    def body(x, w, b, u, out_ref):
        # x: (ninp, MB) f32, lane-dense in the flattened T*B axis.
        if nout == 1:
            # VPU broadcast-multiply + sublane reduction (skip the MXU for the
            # single-row matvec).  w: (ninp, 1), b: (1, 1).
            logits = jnp.sum(x * w, axis=0, keepdims=True) + b          # (1, MB)
        else:
            # W @ x^T so the result is already lane-dense in T*B.
            # w: (nout, ninp), b: (nout, 1).
            logits = jnp.dot(w, x, preferred_element_type=jnp.float32) + b

        # sigmoid + epsilon smoothing: (1-eps)*sigmoid(z) + eps*0.05.
        probs = pl.reciprocal(1.0 + jnp.exp(-logits))                   # EUP recip
        probs = (1.0 - eps) * probs + eps * 0.05                        # in (0.0025, 0.9525)

        take = u < probs                                                # Bernoulli(probs)
        log_p = jnp.log(probs)
        log_1mp = jnp.log(1.0 - probs)

        # Three direct slice stores (no concat -> no lane shuffles).
        out_ref[0] = take.astype(jnp.float32)                           # action
        out_ref[1] = jnp.where(take, log_p, log_1mp)                    # log_pi
        out_ref[2] = -log_p                                             # -log(probs)

    if in_kernel_rng:

        def kernel(seed_ref, x_ref, w_ref, b_ref, out_ref):
            # Distinct PRNG stream per grid block.
            pltpu.prng_seed(seed_ref[0] + pl.program_id(0))
            shape = (nout, x_ref.shape[1])
            bits = pltpu.bitcast(pltpu.prng_random_bits(shape), jnp.uint32)
            # Low 23 bits -> mantissa of a float in [1, 2); subtract 1 -> U[0, 1).
            fbits = (bits & jnp.uint32(0x007FFFFF)) | jnp.uint32(0x3F800000)
            u = pltpu.bitcast(fbits, jnp.float32) - 1.0
            body(x_ref[...], w_ref[...], b_ref[...], u, out_ref)

    else:

        def kernel(x_ref, w_ref, b_ref, u_ref, out_ref):
            body(x_ref[...], w_ref[...], b_ref[...], u_ref[...], out_ref)

    return kernel


@functools.partial(jax.jit, static_argnames=("ninp", "nout", "in_kernel_rng"))
def _controller_forward_impl(xs, w, b, key, *, ninp, nout, in_kernel_rng):
    T, B, _ = xs.shape
    M = T * B

    # ---- lane-dense layout plumbing (wrapper side) -------------------------
    # Flatten all T*B examples onto the lane axis, pick a column block that is
    # a multiple of 128 and comfortably under VMEM (also fine on v7x's 64MiB),
    # and pad the column count so the grid divides evenly.
    bytes_per_col = 4 * (ninp + 4 * nout + 1)
    budget = 4 << 20                                   # per pipeline buffer set
    mb = max(_LANE, min(2048, (budget // bytes_per_col) // _LANE * _LANE))
    mb = min(mb, _round_up(M, _LANE))
    mp = _round_up(M, mb)
    n_blocks = mp // mb

    xt = jnp.transpose(xs.astype(jnp.float32).reshape(M, ninp))         # (ninp, M)
    xt = jnp.pad(xt, ((0, 0), (0, mp - M)))                             # (ninp, mp)

    kernel = _make_kernel(ninp, nout, EPSILON, in_kernel_rng)

    x_spec = pl.BlockSpec((ninp, mb), lambda i, *_: (0, i))
    w_spec = pl.BlockSpec(w.shape, lambda i, *_: (0, 0))                 # resident
    b_spec = pl.BlockSpec(b.shape, lambda i, *_: (0, 0))                 # resident
    out_spec = pl.BlockSpec((3, nout, mb), lambda i, *_: (0, 0, i))

    if in_kernel_rng:
        seed = jax.random.randint(key, (1,), 0, jnp.iinfo(jnp.int32).max,
                                  dtype=jnp.int32)
        num_prefetch = 1
        operands = (seed, xt, w, b)
        in_specs = [x_spec, w_spec, b_spec]
    else:
        # Fallback: stream host-generated uniforms (same distribution).
        u = jax.random.uniform(key, (nout, mp), dtype=jnp.float32)
        num_prefetch = 0
        operands = (xt, w, b, u)
        in_specs = [x_spec, w_spec, b_spec,
                    pl.BlockSpec((nout, mb), lambda i, *_: (0, i))]

    cost = pl.CostEstimate(
        flops=2 * mp * ninp * nout + 12 * mp * nout,
        transcendentals=4 * mp * nout,
        bytes_accessed=4 * (ninp * mp + 4 * nout * mp + w.size + b.size),
    )

    out = pl.pallas_call(
        kernel,
        out_shape=jax.ShapeDtypeStruct((3, nout, mp), jnp.float32),
        grid_spec=pltpu.PrefetchScalarGridSpec(
            num_scalar_prefetch=num_prefetch,
            grid=(n_blocks,),
            in_specs=in_specs,
            out_specs=out_spec,
        ),
        compiler_params=pltpu.CompilerParams(
            dimension_semantics=("parallel",)),
        cost_estimate=cost,
    )(*operands)

    out = out[:, :, :M]                                                 # (3, nout, M)

    def unflatten(v):                                                   # (nout, M) -> (T, B, nout)
        return jnp.transpose(v).reshape(T, B, nout)

    action = unflatten(out[0])
    log_pi = unflatten(out[1])
    neg_log_p = unflatten(out[2])
    if T == 1:  # matches the .squeeze(0) in the PyTorch forward
        action, log_pi, neg_log_p = action[0], log_pi[0], neg_log_p[0]
    return action, log_pi, neg_log_p


class ControllerNew:
    """Pallas port of Controller_New (nn.Linear -> sigmoid -> Bernoulli)."""

    def __init__(self, weight, bias):
        # weight: (nout, ninp), bias: (nout,).  Stored once in the layout the
        # kernel consumes (no per-call transpose/cast on the hot path).
        self.nout, self.ninp = weight.shape
        w = jnp.asarray(weight, jnp.float32)
        b = jnp.asarray(bias, jnp.float32)
        if self.nout == 1:
            self.w = w.T                          # (ninp, 1): broadcast column
            self.b = b.reshape(1, 1)
        else:
            self.w = w                            # (nout, ninp): W @ x^T
            self.b = b.reshape(self.nout, 1)
        self._rng_in_kernel = True                # prefer on-chip TPU PRNG
        self._rng_validated = False

    def __call__(self, x, key):
        """x: (T, B, ninp); normally T == 1 (then squeezed, as in PyTorch).
        T > 1 fuses several controller steps into one pallas_call."""
        assert x.ndim == 3 and x.shape[-1] == self.ninp
        if self._rng_in_kernel:
            try:
                out = _controller_forward_impl(
                    x, self.w, self.b, key,
                    ninp=self.ninp, nout=self.nout, in_kernel_rng=True)
                if not self._rng_validated:
                    jax.block_until_ready(out)
                    self._rng_validated = True
                return out
            except Exception:
                # TODO(synk): the on-chip PRNG primitives have no interpret-
                # mode lowering; fall back to streaming host-side uniforms.
                self._rng_in_kernel = False
        return _controller_forward_impl(
            x, self.w, self.b, key,
            ninp=self.ninp, nout=self.nout, in_kernel_rng=False)


def init_params(key, ninp, nout):
    """nn.Linear default init: U(-1/sqrt(ninp), 1/sqrt(ninp))."""
    kw, kb = jax.random.split(key)
    bound = 1.0 / jnp.sqrt(jnp.float32(ninp))
    weight = jax.random.uniform(kw, (nout, ninp), jnp.float32, -bound, bound)
    bias = jax.random.uniform(kb, (nout,), jnp.float32, -bound, bound)
    return weight, bias


def _ref_probs(x2d, weight, bias):
    logits = x2d @ weight.T + bias
    p = 1.0 / (1.0 + jnp.exp(-logits))
    return (1.0 - EPSILON) * p + EPSILON * 0.05


if __name__ == "__main__":
    key = jax.random.PRNGKey(0)
    keys = jax.random.split(key, 8)

    # --- single controller step (the typical T == 1 call) -------------------
    B, ninp, nout = 8, 32, 1
    x = jax.random.normal(keys[0], (1, B, ninp), dtype=jnp.float32)
    weight, bias = init_params(keys[1], ninp, nout)
    ctrl = ControllerNew(weight, bias)

    action, log_pi, neg_log_p = ctrl(x, keys[2])
    jax.block_until_ready((action, log_pi, neg_log_p))

    assert action.shape == (B, nout) and log_pi.shape == (B, nout)
    assert neg_log_p.shape == (B, nout)
    assert bool(jnp.all((action == 0.0) | (action == 1.0)))
    assert bool(jnp.all(neg_log_p > 0.0))

    # Reference math, conditioned on the kernel's own sampled action so
    # uniform-boundary ties cannot flip the comparison.
    probs_ref = _ref_probs(x[0], weight, bias)
    log_pi_ref = jnp.where(action > 0.5, jnp.log(probs_ref),
                           jnp.log(1.0 - probs_ref))
    assert bool(jnp.allclose(neg_log_p, -jnp.log(probs_ref), atol=1e-4, rtol=1e-4))
    assert bool(jnp.allclose(log_pi, log_pi_ref, atol=1e-4, rtol=1e-4))

    # --- multi-step path: T steps fused into one lane-dense pallas_call -----
    T = 5
    xs = jax.random.normal(keys[3], (T, B, ninp), dtype=jnp.float32)
    a_T, lp_T, nlp_T = ctrl(xs, keys[4])
    jax.block_until_ready((a_T, lp_T, nlp_T))
    assert a_T.shape == (T, B, nout) and lp_T.shape == (T, B, nout)
    assert bool(jnp.all((a_T == 0.0) | (a_T == 1.0)))
    p_T = _ref_probs(xs.reshape(T * B, ninp), weight, bias).reshape(T, B, nout)
    lp_T_ref = jnp.where(a_T > 0.5, jnp.log(p_T), jnp.log(1.0 - p_T))
    assert bool(jnp.allclose(lp_T, lp_T_ref, atol=1e-4, rtol=1e-4))
    assert bool(jnp.allclose(nlp_T, -jnp.log(p_T), atol=1e-4, rtol=1e-4))

    # --- nout > 1 (lane-dense MXU branch) ------------------------------------
    nout3 = 3
    w3, b3 = init_params(keys[5], ninp, nout3)
    ctrl3 = ControllerNew(w3, b3)
    x3 = jax.random.normal(keys[6], (2, 16, ninp), dtype=jnp.float32)
    a3, lp3, nlp3 = ctrl3(x3, keys[7])
    jax.block_until_ready((a3, lp3, nlp3))
    assert a3.shape == (2, 16, nout3)
    assert bool(jnp.all((a3 == 0.0) | (a3 == 1.0)))
    p3 = _ref_probs(x3.reshape(32, ninp), w3, b3).reshape(2, 16, nout3)
    lp3_ref = jnp.where(a3 > 0.5, jnp.log(p3), jnp.log(1.0 - p3))
    assert bool(jnp.allclose(lp3, lp3_ref, atol=1e-4, rtol=1e-4))
    assert bool(jnp.allclose(nlp3, -jnp.log(p3), atol=1e-4, rtol=1e-4))

    # --- coarse statistical sanity of the Bernoulli sampling ----------------
    Ts, Bs = 4, 256
    x_big = jax.random.normal(jax.random.PRNGKey(1), (Ts, Bs, ninp),
                              dtype=jnp.float32)
    a_big, _, _ = ctrl(x_big, jax.random.PRNGKey(2))
    p_big = _ref_probs(x_big.reshape(Ts * Bs, ninp), weight, bias)
    assert abs(float(jnp.mean(a_big)) - float(jnp.mean(p_big))) < 0.1

    print("KERNEL_OK")
</pallas_src>

<mosaic_0001>
module attributes {stable_mosaic.version = 11 : i64} {
  func.func @kernel(%arg0: i32, %arg1: memref<1xi32, #tpu.memory_space<smem>>, %arg2: memref<32x128xf32, #tpu.memory_space<vmem>>, %arg3: memref<32x1xf32, #tpu.memory_space<vmem>>, %arg4: memref<1x1xf32, #tpu.memory_space<vmem>>, %arg5: memref<3x1x128xf32, #tpu.memory_space<vmem>>) attributes {dimension_semantics = [#tpu.dimension_semantics<parallel>], iteration_bounds = array<i64: 1>, scalar_prefetch = 1 : i64, scratch_operands = 0 : i64, tpu.core_type = #tpu.core_type<tc>, window_params = [{transform_indices = @transform_0, window_bounds = array<i64: 32, 128>}, {pipeline_mode = #tpu.pipeline_mode<synchronous>, transform_indices = @transform_1, window_bounds = array<i64: 32, 1>}, {pipeline_mode = #tpu.pipeline_mode<synchronous>, transform_indices = @transform_2, window_bounds = array<i64: 1, 1>}, {transform_indices = @transform_3, window_bounds = array<i64: 3, 1, 128>}]} {
    %c0 = arith.constant 0 : index
    %0 = memref.load %arg1[%c0] : memref<1xi32, #tpu.memory_space<smem>>
    %1 = arith.addi %0, %arg0 : i32
    "tpu.prng_set_seed_32"(%1) : (i32) -> ()
    %2 = "tpu.prng_random_bits"() : () -> vector<1x128xi32>
    %3 = tpu.bitcast %2 : vector<1x128xi32> -> vector<1x128xi32>
    %c8388607_i32 = arith.constant 8388607 : i32
    %4 = vector.broadcast %c8388607_i32 : i32 to vector<1x128xi32>
    %5 = arith.andi %3, %4 : vector<1x128xi32>
    %c1065353216_i32 = arith.constant 1065353216 : i32
    %6 = vector.broadcast %c1065353216_i32 : i32 to vector<1x128xi32>
    %7 = arith.ori %5, %6 : vector<1x128xi32>
    %8 = tpu.bitcast %7 : vector<1x128xi32> -> vector<1x128xf32>
    %cst = arith.constant 1.000000e+00 : f32
    %9 = vector.broadcast %cst : f32 to vector<1x128xf32>
    %10 = arith.subf %8, %9 : vector<1x128xf32>
    %c0_0 = arith.constant 0 : index
    %c0_1 = arith.constant 0 : index
    %11 = vector.load %arg2[%c0_0, %c0_1] : memref<32x128xf32, #tpu.memory_space<vmem>>, vector<32x128xf32>
    %c0_2 = arith.constant 0 : index
    %c0_3 = arith.constant 0 : index
    %12 = vector.load %arg3[%c0_2, %c0_3] : memref<32x1xf32, #tpu.memory_space<vmem>>, vector<32x1xf32>
    %c0_4 = arith.constant 0 : index
    %c0_5 = arith.constant 0 : index
    %13 = vector.load %arg4[%c0_4, %c0_5] : memref<1x1xf32, #tpu.memory_space<vmem>>, vector<1x1xf32>
    %14 = vector.broadcast %12 : vector<32x1xf32> to vector<32x128xf32>
    %15 = arith.mulf %11, %14 : vector<32x128xf32>
    %cst_6 = arith.constant dense<0.000000e+00> : vector<128xf32>
    %16 = vector.multi_reduction <add>, %15, %cst_6 [0] : vector<32x128xf32> to vector<128xf32>
    %17 = vector.shape_cast %16 : vector<128xf32> to vector<1x128xf32>
    %18 = vector.broadcast %13 : vector<1x1xf32> to vector<1x128xf32>
    %19 = arith.addf %17, %18 : vector<1x128xf32>
    %cst_7 = arith.constant 0.000000e+00 : f32
    %20 = vector.broadcast %cst_7 : f32 to vector<1x128xf32>
    %21 = arith.subf %20, %19 : vector<1x128xf32>
    %22 = math.exp %21 : vector<1x128xf32>
    %cst_8 = arith.constant 1.000000e+00 : f32
    %23 = vector.broadcast %cst_8 : f32 to vector<1x128xf32>
    %24 = arith.addf %23, %22 : vector<1x128xf32>
    %25 = tpu.reciprocal %24 : vector<1x128xf32> -> vector<1x128xf32>
    %cst_9 = arith.constant 0.949999988 : f32
    %26 = vector.broadcast %cst_9 : f32 to vector<1x128xf32>
    %27 = arith.mulf %26, %25 : vector<1x128xf32>
    %cst_10 = arith.constant 2.500000e-03 : f32
    %28 = vector.broadcast %cst_10 : f32 to vector<1x128xf32>
    %29 = arith.addf %27, %28 : vector<1x128xf32>
    %30 = arith.cmpf olt, %10, %29 : vector<1x128xf32>
    %31 = math.log %29 : vector<1x128xf32>
    %cst_11 = arith.constant 1.000000e+00 : f32
    %32 = vector.broadcast %cst_11 : f32 to vector<1x128xf32>
    %33 = arith.subf %32, %29 : vector<1x128xf32>
    %34 = math.log %33 : vector<1x128xf32>
    %35 = arith.extui %30 : vector<1x128xi1> to vector<1x128xi32>
    %36 = arith.sitofp %35 : vector<1x128xi32> to vector<1x128xf32>
    %c0_12 = arith.constant 0 : index
    %c0_13 = arith.constant 0 : index
    %c0_14 = arith.constant 0 : index
    %37 = vector.load %arg5[%c0_12, %c0_13, %c0_14] : memref<3x1x128xf32, #tpu.memory_space<vmem>>, vector<1x1x128xf32>
    %38 = vector.shape_cast %37 : vector<1x1x128xf32> to vector<1x128xf32>
    %39 = vector.shape_cast %36 : vector<1x128xf32> to vector<1x1x128xf32>
    tpu.vector_store %arg5[%c0_12, %c0_13, %c0_14], %39 {strides = array<i32>} : memref<3x1x128xf32, #tpu.memory_space<vmem>>, vector<1x1x128xf32>,
    %40 = arith.select %30, %31, %34 : vector<1x128xi1>, vector<1x128xf32>
    %c1 = arith.constant 1 : index
    %c0_15 = arith.constant 0 : index
    %c0_16 = arith.constant 0 : index
    %41 = vector.load %arg5[%c1, %c0_15, %c0_16] : memref<3x1x128xf32, #tpu.memory_space<vmem>>, vector<1x1x128xf32>
    %42 = vector.shape_cast %41 : vector<1x1x128xf32> to vector<1x128xf32>
    %43 = vector.shape_cast %40 : vector<1x128xf32> to vector<1x1x128xf32>
    tpu.vector_store %arg5[%c1, %c0_15, %c0_16], %43 {strides = array<i32>} : memref<3x1x128xf32, #tpu.memory_space<vmem>>, vector<1x1x128xf32>,
    %cst_17 = arith.constant 0.000000e+00 : f32
    %44 = vector.broadcast %cst_17 : f32 to vector<1x128xf32>
    %45 = arith.subf %44, %31 : vector<1x128xf32>
    %c2 = arith.constant 2 : index
    %c0_18 = arith.constant 0 : index
    %c0_19 = arith.constant 0 : index
    %46 = vector.load %arg5[%c2, %c0_18, %c0_19] : memref<3x1x128xf32, #tpu.memory_space<vmem>>, vector<1x1x128xf32>
    %47 = vector.shape_cast %46 : vector<1x1x128xf32> to vector<1x128xf32>
    %48 = vector.shape_cast %45 : vector<1x128xf32> to vector<1x1x128xf32>
    tpu.vector_store %arg5[%c2, %c0_18, %c0_19], %48 {strides = array<i32>} : memref<3x1x128xf32, #tpu.memory_space<vmem>>, vector<1x1x128xf32>,
    return
  }
  func.func @transform_0(%arg0: i32, %arg1: memref<1xi32, #tpu.memory_space<smem>>) -> (i32, i32) {
    %c0_i32 = arith.constant 0 : i32
    %c0_i32_0 = arith.constant 0 : i32
    return %c0_i32, %arg0 : i32, i32
  }
  func.func @transform_1(%arg0: i32, %arg1: memref<1xi32, #tpu.memory_space<smem>>) -> (i32, i32) {
    %c0_i32 = arith.constant 0 : i32
    %c0_i32_0 = arith.constant 0 : i32
    %c0_i32_1 = arith.constant 0 : i32
    return %c0_i32, %c0_i32_0 : i32, i32
  }
  func.func @transform_2(%arg0: i32, %arg1: memref<1xi32, #tpu.memory_space<smem>>) -> (i32, i32) {
    %c0_i32 = arith.constant 0 : i32
    %c0_i32_0 = arith.constant 0 : i32
    %c0_i32_1 = arith.constant 0 : i32
    return %c0_i32, %c0_i32_0 : i32, i32
  }
  func.func @transform_3(%arg0: i32, %arg1: memref<1xi32, #tpu.memory_space<smem>>) -> (i32, i32, i32) {
    %c0_i32 = arith.constant 0 : i32
    %c0_i32_0 = arith.constant 0 : i32
    %c0_i32_1 = arith.constant 0 : i32
    return %c0_i32, %c0_i32_0, %arg0 : i32, i32, i32
  }
}

module attributes {stable_mosaic.version = 11 : i64} {
  func.func @kernel(%arg0: i32, %arg1: memref<32x128xf32, #tpu.memory_space<vmem>>, %arg2: memref<32x1xf32, #tpu.memory_space<vmem>>, %arg3: memref<1x1xf32, #tpu.memory_space<vmem>>, %arg4: memref<1x128xf32, #tpu.memory_space<vmem>>, %arg5: memref<3x1x128xf32, #tpu.memory_space<vmem>>) attributes {dimension_semantics = [#tpu.dimension_semantics<parallel>], iteration_bounds = array<i64: 1>, scalar_prefetch = 0 : i64, scratch_operands = 0 : i64, tpu.core_type = #tpu.core_type<tc>, window_params = [{transform_indices = @transform_0, window_bounds = array<i64: 32, 128>}, {pipeline_mode = #tpu.pipeline_mode<synchronous>, transform_indices = @transform_1, window_bounds = array<i64: 32, 1>}, {pipeline_mode = #tpu.pipeline_mode<synchronous>, transform_indices = @transform_2, window_bounds = array<i64: 1, 1>}, {transform_indices = @transform_3, window_bounds = array<i64: 1, 128>}, {transform_indices = @transform_4, window_bounds = array<i64: 3, 1, 128>}]} {
    %c0 = arith.constant 0 : index
    %c0_0 = arith.constant 0 : index
    %0 = vector.load %arg1[%c0, %c0_0] : memref<32x128xf32, #tpu.memory_space<vmem>>, vector<32x128xf32>
    %c0_1 = arith.constant 0 : index
    %c0_2 = arith.constant 0 : index
    %1 = vector.load %arg2[%c0_1, %c0_2] : memref<32x1xf32, #tpu.memory_space<vmem>>, vector<32x1xf32>
    %c0_3 = arith.constant 0 : index
    %c0_4 = arith.constant 0 : index
    %2 = vector.load %arg3[%c0_3, %c0_4] : memref<1x1xf32, #tpu.memory_space<vmem>>, vector<1x1xf32>
    %c0_5 = arith.constant 0 : index
    %c0_6 = arith.constant 0 : index
    %3 = vector.load %arg4[%c0_5, %c0_6] : memref<1x128xf32, #tpu.memory_space<vmem>>, vector<1x128xf32>
    %4 = vector.broadcast %1 : vector<32x1xf32> to vector<32x128xf32>
    %5 = arith.mulf %0, %4 : vector<32x128xf32>
    %cst = arith.constant dense<0.000000e+00> : vector<128xf32>
    %6 = vector.multi_reduction <add>, %5, %cst [0] : vector<32x128xf32> to vector<128xf32>
    %7 = vector.shape_cast %6 : vector<128xf32> to vector<1x128xf32>
    %8 = vector.broadcast %2 : vector<1x1xf32> to vector<1x128xf32>
    %9 = arith.addf %7, %8 : vector<1x128xf32>
    %cst_7 = arith.constant 0.000000e+00 : f32
    %10 = vector.broadcast %cst_7 : f32 to vector<1x128xf32>
    %11 = arith.subf %10, %9 : vector<1x128xf32>
    %12 = math.exp %11 : vector<1x128xf32>
    %cst_8 = arith.constant 1.000000e+00 : f32
    %13 = vector.broadcast %cst_8 : f32 to vector<1x128xf32>
    %14 = arith.addf %13, %12 : vector<1x128xf32>
    %15 = tpu.reciprocal %14 : vector<1x128xf32> -> vector<1x128xf32>
    %cst_9 = arith.constant 0.949999988 : f32
    %16 = vector.broadcast %cst_9 : f32 to vector<1x128xf32>
    %17 = arith.mulf %16, %15 : vector<1x128xf32>
    %cst_10 = arith.constant 2.500000e-03 : f32
    %18 = vector.broadcast %cst_10 : f32 to vector<1x128xf32>
    %19 = arith.addf %17, %18 : vector<1x128xf32>
    %20 = arith.cmpf olt, %3, %19 : vector<1x128xf32>
    %21 = math.log %19 : vector<1x128xf32>
    %cst_11 = arith.constant 1.000000e+00 : f32
    %22 = vector.broadcast %cst_11 : f32 to vector<1x128xf32>
    %23 = arith.subf %22, %19 : vector<1x128xf32>
    %24 = math.log %23 : vector<1x128xf32>
    %25 = arith.extui %20 : vector<1x128xi1> to vector<1x128xi32>
    %26 = arith.sitofp %25 : vector<1x128xi32> to vector<1x128xf32>
    %c0_12 = arith.constant 0 : index
    %c0_13 = arith.constant 0 : index
    %c0_14 = arith.constant 0 : index
    %27 = vector.load %arg5[%c0_12, %c0_13, %c0_14] : memref<3x1x128xf32, #tpu.memory_space<vmem>>, vector<1x1x128xf32>
    %28 = vector.shape_cast %27 : vector<1x1x128xf32> to vector<1x128xf32>
    %29 = vector.shape_cast %26 : vector<1x128xf32> to vector<1x1x128xf32>
    tpu.vector_store %arg5[%c0_12, %c0_13, %c0_14], %29 {strides = array<i32>} : memref<3x1x128xf32, #tpu.memory_space<vmem>>, vector<1x1x128xf32>,
    %30 = arith.select %20, %21, %24 : vector<1x128xi1>, vector<1x128xf32>
    %c1 = arith.constant 1 : index
    %c0_15 = arith.constant 0 : index
    %c0_16 = arith.constant 0 : index
    %31 = vector.load %arg5[%c1, %c0_15, %c0_16] : memref<3x1x128xf32, #tpu.memory_space<vmem>>, vector<1x1x128xf32>
    %32 = vector.shape_cast %31 : vector<1x1x128xf32> to vector<1x128xf32>
    %33 = vector.shape_cast %30 : vector<1x128xf32> to vector<1x1x128xf32>
    tpu.vector_store %arg5[%c1, %c0_15, %c0_16], %33 {strides = array<i32>} : memref<3x1x128xf32, #tpu.memory_space<vmem>>, vector<1x1x128xf32>,
    %cst_17 = arith.constant 0.000000e+00 : f32
    %34 = vector.broadcast %cst_17 : f32 to vector<1x128xf32>
    %35 = arith.subf %34, %21 : vector<1x128xf32>
    %c2 = arith.constant 2 : index
    %c0_18 = arith.constant 0 : index
    %c0_19 = arith.constant 0 : index
    %36 = vector.load %arg5[%c2, %c0_18, %c0_19] : memref<3x1x128xf32, #tpu.memory_space<vmem>>, vector<1x1x128xf32>
    %37 = vector.shape_cast %36 : vector<1x1x128xf32> to vector<1x128xf32>
    %38 = vector.shape_cast %35 : vector<1x128xf32> to vector<1x1x128xf32>
    tpu.vector_store %arg5[%c2, %c0_18, %c0_19], %38 {strides = array<i32>} : memref<3x1x128xf32, #tpu.memory_space<vmem>>, vector<1x1x128xf32>,
    return
  }
  func.func @transform_0(%arg0: i32) -> (i32, i32) {
    %c0_i32 = arith.constant 0 : i32
    %c0_i32_0 = arith.constant 0 : i32
    return %c0_i32, %arg0 : i32, i32
  }
  func.func @transform_1(%arg0: i32) -> (i32, i32) {
    %c0_i32 = arith.constant 0 : i32
    %c0_i32_0 = arith.constant 0 : i32
    %c0_i32_1 = arith.constant 0 : i32
    return %c0_i32, %c0_i32_0 : i32, i32
  }
  func.func @transform_2(%arg0: i32) -> (i32, i32) {
    %c0_i32 = arith.constant 0 : i32
    %c0_i32_0 = arith.constant 0 : i32
    %c0_i32_1 = arith.constant 0 : i32
    return %c0_i32, %c0_i32_0 : i32, i32
  }
  func.func @transform_3(%arg0: i32) -> (i32, i32) {
    %c0_i32 = arith.constant 0 : i32
    %c0_i32_0 = arith.constant 0 : i32
    return %c0_i32, %arg0 : i32, i32
  }
  func.func @transform_4(%arg0: i32) -> (i32, i32, i32) {
    %c0_i32 = arith.constant 0 : i32
    %c0_i32_0 = arith.constant 0 : i32
    %c0_i32_1 = arith.constant 0 : i32
    return %c0_i32, %c0_i32_0, %arg0 : i32, i32, i32
  }
}

</mosaic_0001>

<llo_original>
// kernel: _controller_forward_impl.1
$region0: #{_controller_forward_impl.1}
  #allocation0 [shape = 'u32[]', space=smem, size = 0x4, offset = 0x4, fixed_abs, tag = 'smem constant byte address 0x4 - core index']
  #allocation1 [shape = 'u32[144,128]{1,0:T(1,128)}', space=vmem, size = 0x12000, scoped, tag = 'internal scratch']
  #allocation2 [shape = 's32[1]{0}', space=sflag, size = 0x4, scoped, tag = 'scoped memory for _controller_forward_impl.1']
  #allocation3 [shape = 's32[1]{0:T(128)S(6)}', space=smem, size = 0x200, scoped, tag = 'prefetched SMEM operand 0']
  #allocation4 [shape = 'f32[1,1]{1,0:T(1,128)S(1)}', space=vmem, size = 0x200, scoped, tag = 'scoped memory for _controller_forward_impl.1']
  %s0 = inlined_call_operand.<no memory space> [shape: s32[1], index: 0, kind: input, shape index: {}]
  %s1 = inlined_call_operand.vmem [shape: f32[32,128], index: 1, kind: input, shape index: {}]
  %s2 = inlined_call_operand.vmem [shape: f32[32,1], index: 2, kind: input, shape index: {}]
  %s3 = inlined_call_operand.<no memory space> [shape: f32[1,1], index: 3, kind: input, shape index: {}]
  %s4 = inlined_call_operand.vmem [shape: f32[3,1,128], index: 4, kind: output, shape index: {}]
  %s5 = sld [smem:[#allocation0]]
  $region22: #{_controller_forward_impl.1} parent=0
    _
  %s7 = ssub.s32 1, %s5
  %s8 = scalar_select 0, %s7, %s5
  %9 = sst [smem:[#allocation3]] %s0
  %v10 = vstv %s3
  %11 = vst [vmem:[#allocation4] sm:$0x1] %v10
  // Predicated region
  $region2: #{_controller_forward_impl.1} parent=0 // pred_check
    _
  $region3: #{_controller_forward_impl.1} parent=0 // pred_check_branch
    %13 = sbr.rel (0) target = $region5
  $region4: #{_controller_forward_impl.1} parent=0 // pred_region
    _
  $region5: #{_controller_forward_impl.1} parent=0 // pred_fallthru
    _
  // Predicated region
  $region6: #{_controller_forward_impl.1} parent=0 // pred_check
    _
  $region7: #{_controller_forward_impl.1} parent=0 // pred_check_branch
    %15 = sbr.rel (0) target = $region9
  $region8: #{_controller_forward_impl.1} parent=0 // pred_region
    _
  $region9: #{_controller_forward_impl.1} parent=0 // pred_fallthru
    _
  // Predicated region
  $region10: #{_controller_forward_impl.1} parent=0 // pred_check
    _
  $region11: #{_controller_forward_impl.1} parent=0 // pred_check_branch
    %17 = sbr.rel (0) target = $region13
  $region12: #{_controller_forward_impl.1} parent=0 // pred_region
    _
  $region13: #{_controller_forward_impl.1} parent=0 // pred_fallthru
    _
  %s18 = sld [smem:[#allocation3]]
  %s19 = sadd.s32 %s18, 0
  %v20 = vlaneseq
  %v21 = vstv %s19
  %v22 = vxor.u32 %v21, %v21
  %v23 = vxor.u32 %v22, 466688986
  %v24 = vadd.s32 %v20, %v21
  %v25 = vadd.s32 %v24, %v24
  %v26 = vshll.u32 %v24, 13
  %v27 = vshrl.u32 %v24, 19
  %v28 = vor.u32 %v26, %v27
  %v29 = vxor.u32 %v25, %v28
  %v30 = vadd.s32 %v25, %v29
  %v31 = vshll.u32 %v29, 15
  %v32 = vshrl.u32 %v29, 17
  %v33 = vor.u32 %v31, %v32
  %v34 = vxor.u32 %v30, %v33
  %v35 = vadd.s32 %v30, %v34
  %v36 = vshll.u32 %v34, 26
  %v37 = vshrl.u32 %v34, 6
  %v38 = vor.u32 %v36, %v37
  %v39 = vxor.u32 %v35, %v38
  %v40 = vadd.s32 %v35, %v39
  %v41 = vshll.u32 %v39, 6
  %v42 = vshrl.u32 %v39, 26
  %v43 = vor.u32 %v41, %v42
  %v44 = vxor.u32 %v40, %v43
  %v45 = vadd.s32 %v40, %v21
  %v46 = vadd.s32 %v44, %v23
  %v47 = vadd.s32 %v46, 1
  %v48 = vadd.s32 %v45, %v47
  %v49 = vshll.u32 %v47, 17
  %v50 = vshrl.u32 %v47, 15
  %v51 = vor.u32 %v49, %v50
  %v52 = vxor.u32 %v48, %v51
  %v53 = vadd.s32 %v48, %v52
  %v54 = vshll.u32 %v52, 29
  %v55 = vshrl.u32 %v52, 3
  %v56 = vor.u32 %v54, %v55
  %v57 = vxor.u32 %v53, %v56
  %v58 = vadd.s32 %v53, %v57
  %v59 = vshll.u32 %v57, 16
  %v60 = vshrl.u32 %v57, 16
  %v61 = vor.u32 %v59, %v60
  %v62 = vxor.u32 %v58, %v61
  %v63 = vadd.s32 %v58, %v62
  %v64 = vshll.u32 %v62, 24
  %v65 = vshrl.u32 %v62, 8
  %v66 = vor.u32 %v64, %v65
  %v67 = vxor.u32 %v63, %v66
  %v68 = vadd.s32 %v63, %v23
  %v69 = vadd.s32 %v67, %v21
  %v70 = vadd.s32 %v69, 2
  %v71 = vadd.s32 %v68, %v70
  %v72 = vshll.u32 %v70, 13
  %v73 = vshrl.u32 %v70, 19
  %v74 = vor.u32 %v72, %v73
  %v75 = vxor.u32 %v71, %v74
  %v76 = vadd.s32 %v71, %v75
  %v77 = vshll.u32 %v75, 15
  %v78 = vshrl.u32 %v75, 17
  %v79 = vor.u32 %v77, %v78
  %v80 = vxor.u32 %v76, %v79
  %v81 = vadd.s32 %v76, %v80
  %v82 = vshll.u32 %v80, 26
  %v83 = vshrl.u32 %v80, 6
  %v84 = vor.u32 %v82, %v83
  %v85 = vxor.u32 %v81, %v84
  %v86 = vadd.s32 %v81, %v85
  %v87 = vshll.u32 %v85, 6
  %v88 = vshrl.u32 %v85, 26
  %v89 = vor.u32 %v87, %v88
  %v90 = vxor.u32 %v86, %v89
  %v91 = vadd.s32 %v86, %v21
  %v92 = vadd.s32 %v90, %v21
  %v93 = vadd.s32 %v92, 3
  %v94 = vadd.s32 %v91, %v93
  %v95 = vshll.u32 %v93, 17
  %v96 = vshrl.u32 %v93, 15
  %v97 = vor.u32 %v95, %v96
  %v98 = vxor.u32 %v94, %v97
  %v99 = vadd.s32 %v94, %v98
  %v100 = vshll.u32 %v98, 29
  %v101 = vshrl.u32 %v98, 3
  %v102 = vor.u32 %v100, %v101
  %v103 = vxor.u32 %v99, %v102
  %v104 = vadd.s32 %v99, %v103
  %v105 = vshll.u32 %v103, 16
  %v106 = vshrl.u32 %v103, 16
  %v107 = vor.u32 %v105, %v106
  %v108 = vxor.u32 %v104, %v107
  %v109 = vadd.s32 %v104, %v108
  %v110 = vshll.u32 %v108, 24
  %v111 = vshrl.u32 %v108, 8
  %v112 = vor.u32 %v110, %v111
  %v113 = vxor.u32 %v109, %v112
  %v114 = vadd.s32 %v109, %v21
  %v115 = vadd.s32 %v113, %v23
  %v116 = vadd.s32 %v115, 4
  %v117 = vadd.s32 %v114, %v116
  %v118 = vshll.u32 %v116, 13
  %v119 = vshrl.u32 %v116, 19
  %v120 = vor.u32 %v118, %v119
  %v121 = vxor.u32 %v117, %v120
  %v122 = vadd.s32 %v117, %v121
  %v123 = vshll.u32 %v121, 15
  %v124 = vshrl.u32 %v121, 17
  %v125 = vor.u32 %v123, %v124
  %v126 = vxor.u32 %v122, %v125
  %v127 = vadd.s32 %v122, %v126
  %v128 = vshll.u32 %v126, 26
  %v129 = vshrl.u32 %v126, 6
  %v130 = vor.u32 %v128, %v129
  %v131 = vxor.u32 %v127, %v130
  %v132 = vadd.s32 %v127, %v131
  %v133 = vshll.u32 %v131, 6
  %v134 = vshrl.u32 %v131, 26
  %v135 = vor.u32 %v133, %v134
  %v136 = vxor.u32 %v132, %v135
  %v137 = vadd.s32 %v132, %v23
  %v138 = vadd.s32 %v136, %v21
  %v139 = vadd.s32 %v138, 5
  %v140 = vxor.u32 %v137, %v139
  %141 = set.rngseed %v140
  %v142 = vrng
  %v143 = vand.u32 %v142, 8388607
  %v144 = vor.u32 %v143, 1065353216
  %v146 = vsub.f32 %v144, 1.0
  %v147 = vld [vmem:[%s1] sm:$0xff]
  %v148 = vld [vmem:[%s1 + $0x8] sm:$0xff]
  %v149 = vld [vmem:[%s1 + $0x10] sm:$0xff]
  %v150 = vld [vmem:[%s1 + $0x18] sm:$0xff]
  %v151 = vld [vmem:[%s2] sm:$0xff]
  %v152 = vld [vmem:[%s2 + $0x8] sm:$0xff]
  %v153 = vld [vmem:[%s2 + $0x10] sm:$0xff]
  %v154 = vld [vmem:[%s2 + $0x18] sm:$0xff]
  %v155 = vld [vmem:[#allocation4] sm:$0x1]
  %157 = vset.pattern.permute.xlu0 0
  %158 = vperm.xlu0 %157, %v151
  %v159 = vpop.permute.xlu0 %158
  %162 = vset.pattern.permute.xlu0 0
  %163 = vperm.xlu0 %162, %v152
  %v164 = vpop.permute.xlu0 %163
  %167 = vset.pattern.permute.xlu0 0
  %168 = vperm.xlu0 %167, %v153
  %v169 = vpop.permute.xlu0 %168
  %172 = vset.pattern.permute.xlu0 0
  %173 = vperm.xlu0 %172, %v154
  %v174 = vpop.permute.xlu0 %173
  %v176 = vmul.f32 %v147, %v159
  %v177 = vmul.f32 %v148, %v164
  %v178 = vmul.f32 %v149, %v169
  %v179 = vmul.f32 %v150, %v174
  %v180 = vadd.f32 %v176, %v177
  %v181 = vadd.f32 %v180, %v178
  %v182 = vadd.f32 %v181, %v179
  %v183 = vrot.slane %v182, 4
  %v184 = vadd.f32 %v182, %v183
  %v185 = vrot.slane %v184, 2
  %v186 = vadd.f32 %v184, %v185
  %v187 = vrot.slane %v186, 1
  %v188 = vadd.f32 %v186, %v187
  %190 = vset.pattern.permute.xlu0 0
  %191 = vperm.xlu0 %190, %v155
  %v192 = vpop.permute.xlu0 %191
  %v194 = vlaneseq
  %v195 = vshrl.u32 %v194, 7
  %v196 = vsub.s32 0, %v195
  %v197 = vrot.slane %v192, %v196
  %v198 = vadd.f32 %v188, %v197
  %v199 = vsub.f32 0.0, %v198
  %v200 = vmul.f32 %v199, 1.442695
  %v201 = vpow.pop %v200
  %v202 = vadd.f32 %v201, 1.0
  %v203 = vrcp.pop %v202
  %v204 = vmul.f32 %v203, 0.95
  %v205 = vadd.f32 %v204, 0.0025
  %vm206 = vcmp.lt.f32.partialorder %v146, %v205
  %v207 = vlog2.pop %v205
  %v208 = vmul.f32 %v207, 0.6931472
  %v209 = vsub.f32 1.0, %v205
  %v210 = vlog2.pop %v209
  %v211 = vmul.f32 %v210, 0.6931472
  %v212 = vsel %vm206, 1, 0
  %v213 = vcvt.s32.f32 %v212
  %214 = vst [vmem:[%s4] sm:$0x1] %v213
  %v215 = vsel %vm206, %v208, %v211
  %s216 = scalar_lea.vmem %s4, 1
  %217 = vst [vmem:[%s216] sm:$0x1] %v215
  %v218 = vsub.f32 0.0, %v208
  %s219 = scalar_lea.vmem %s4, 2
  %220 = vst [vmem:[%s219] sm:$0x1] %v218
  // Predicated region
  $region14: #{_controller_forward_impl.1} parent=0 // pred_check
    _
  $region15: #{_controller_forward_impl.1} parent=0 // pred_check_branch
    %222 = sbr.rel (0) target = $region17
  $region16: #{_controller_forward_impl.1} parent=0 // pred_region
    _
  $region17: #{_controller_forward_impl.1} parent=0 // pred_fallthru
    _
  // Predicated region
  $region18: #{_controller_forward_impl.1} parent=0 // pred_check
    _
  $region19: #{_controller_forward_impl.1} parent=0 // pred_check_branch
    %224 = sbr.rel (0) target = $region21
  $region20: #{_controller_forward_impl.1} parent=0 // pred_region
    _
  $region21: #{_controller_forward_impl.1} parent=0 // pred_fallthru
    _

// kernel: _controller_forward_impl.1
$region0: #{_controller_forward_impl.1}
  #allocation0 [shape = 'u32[]', space=smem, size = 0x4, offset = 0x4, fixed_abs, tag = 'smem constant byte address 0x4 - core index']
  #allocation1 [shape = 'u32[144,128]{1,0:T(1,128)}', space=vmem, size = 0x12000, scoped, tag = 'internal scratch']
  #allocation2 [shape = 'f32[1,1]{1,0:T(1,128)S(1)}', space=vmem, size = 0x200, scoped, tag = 'scoped memory for _controller_forward_impl.1']
  %s0 = inlined_call_operand.vmem [shape: f32[32,128], index: 0, kind: input, shape index: {}]
  %s1 = inlined_call_operand.vmem [shape: f32[32,1], index: 1, kind: input, shape index: {}]
  %s2 = inlined_call_operand.<no memory space> [shape: f32[1,1], index: 2, kind: input, shape index: {}]
  %s3 = inlined_call_operand.vmem [shape: f32[1,128], index: 3, kind: input, shape index: {}]
  %s4 = inlined_call_operand.vmem [shape: f32[3,1,128], index: 4, kind: output, shape index: {}]
  %s5 = sld [smem:[#allocation0]]
  $region26: #{_controller_forward_impl.1} parent=0
    _
  %s7 = ssub.s32 1, %s5
  %s8 = scalar_select 0, %s7, %s5
  %v9 = vstv %s2
  %10 = vst [vmem:[#allocation2] sm:$0x1] %v9
  // Predicated region
  $region2: #{_controller_forward_impl.1} parent=0 // pred_check
    _
  $region3: #{_controller_forward_impl.1} parent=0 // pred_check_branch
    %12 = sbr.rel (0) target = $region5
  $region4: #{_controller_forward_impl.1} parent=0 // pred_region
    _
  $region5: #{_controller_forward_impl.1} parent=0 // pred_fallthru
    _
  // Predicated region
  $region6: #{_controller_forward_impl.1} parent=0 // pred_check
    _
  $region7: #{_controller_forward_impl.1} parent=0 // pred_check_branch
    %14 = sbr.rel (0) target = $region9
  $region8: #{_controller_forward_impl.1} parent=0 // pred_region
    _
  $region9: #{_controller_forward_impl.1} parent=0 // pred_fallthru
    _
  // Predicated region
  $region10: #{_controller_forward_impl.1} parent=0 // pred_check
    _
  $region11: #{_controller_forward_impl.1} parent=0 // pred_check_branch
    %16 = sbr.rel (0) target = $region13
  $region12: #{_controller_forward_impl.1} parent=0 // pred_region
    _
  $region13: #{_controller_forward_impl.1} parent=0 // pred_fallthru
    _
  // Predicated region
  $region14: #{_controller_forward_impl.1} parent=0 // pred_check
    _
  $region15: #{_controller_forward_impl.1} parent=0 // pred_check_branch
    %18 = sbr.rel (0) target = $region17
  $region16: #{_controller_forward_impl.1} parent=0 // pred_region
    _
  $region17: #{_controller_forward_impl.1} parent=0 // pred_fallthru
    _
  %v19 = vld [vmem:[%s0] sm:$0xff]
  %v20 = vld [vmem:[%s0 + $0x8] sm:$0xff]
  %v21 = vld [vmem:[%s0 + $0x10] sm:$0xff]
  %v22 = vld [vmem:[%s0 + $0x18] sm:$0xff]
  %v23 = vld [vmem:[%s1] sm:$0xff]
  %v24 = vld [vmem:[%s1 + $0x8] sm:$0xff]
  %v25 = vld [vmem:[%s1 + $0x10] sm:$0xff]
  %v26 = vld [vmem:[%s1 + $0x18] sm:$0xff]
  %v27 = vld [vmem:[#allocation2] sm:$0x1]
  %v28 = vld [vmem:[%s3] sm:$0x1]
  %30 = vset.pattern.permute.xlu0 0
  %31 = vperm.xlu0 %30, %v23
  %v32 = vpop.permute.xlu0 %31
  %35 = vset.pattern.permute.xlu0 0
  %36 = vperm.xlu0 %35, %v24
  %v37 = vpop.permute.xlu0 %36
  %40 = vset.pattern.permute.xlu0 0
  %41 = vperm.xlu0 %40, %v25
  %v42 = vpop.permute.xlu0 %41
  %45 = vset.pattern.permute.xlu0 0
  %46 = vperm.xlu0 %45, %v26
  %v47 = vpop.permute.xlu0 %46
  %v49 = vmul.f32 %v19, %v32
  %v50 = vmul.f32 %v20, %v37
  %v51 = vmul.f32 %v21, %v42
  %v52 = vmul.f32 %v22, %v47
  %v53 = vadd.f32 %v49, %v50
  %v54 = vadd.f32 %v53, %v51
  %v55 = vadd.f32 %v54, %v52
  %v56 = vrot.slane %v55, 4
  %v57 = vadd.f32 %v55, %v56
  %v58 = vrot.slane %v57, 2
  %v59 = vadd.f32 %v57, %v58
  %v60 = vrot.slane %v59, 1
  %v61 = vadd.f32 %v59, %v60
  %63 = vset.pattern.permute.xlu0 0
  %64 = vperm.xlu0 %63, %v27
  %v65 = vpop.permute.xlu0 %64
  %v67 = vlaneseq
  %v68 = vshrl.u32 %v67, 7
  %v69 = vsub.s32 0, %v68
  %v70 = vrot.slane %v65, %v69
  %v71 = vadd.f32 %v61, %v70
  %v72 = vsub.f32 0.0, %v71
  %v73 = vmul.f32 %v72, 1.442695
  %v74 = vpow.pop %v73
  %v75 = vadd.f32 %v74, 1.0
  %v76 = vrcp.pop %v75
  %v77 = vmul.f32 %v76, 0.95
  %v78 = vadd.f32 %v77, 0.0025
  %vm79 = vcmp.lt.f32.partialorder %v28, %v78
  %v80 = vlog2.pop %v78
  %v81 = vmul.f32 %v80, 0.6931472
  %v82 = vsub.f32 1.0, %v78
  %v83 = vlog2.pop %v82
  %v84 = vmul.f32 %v83, 0.6931472
  %v85 = vsel %vm79, 1, 0
  %v86 = vcvt.s32.f32 %v85
  %87 = vst [vmem:[%s4] sm:$0x1] %v86
  %v88 = vsel %vm79, %v81, %v84
  %s89 = scalar_lea.vmem %s4, 1
  %90 = vst [vmem:[%s89] sm:$0x1] %v88
  %v91 = vsub.f32 0.0, %v81
  %s92 = scalar_lea.vmem %s4, 2
  %93 = vst [vmem:[%s92] sm:$0x1] %v91
  // Predicated region
  $region18: #{_controller_forward_impl.1} parent=0 // pred_check
    _
  $region19: #{_controller_forward_impl.1} parent=0 // pred_check_branch
    %95 = sbr.rel (0) target = $region21
  $region20: #{_controller_forward_impl.1} parent=0 // pred_region
    _
  $region21: #{_controller_forward_impl.1} parent=0 // pred_fallthru
    _
  // Predicated region
  $region22: #{_controller_forward_impl.1} parent=0 // pred_check
    _
  $region23: #{_controller_forward_impl.1} parent=0 // pred_check_branch
    %97 = sbr.rel (0) target = $region25
  $region24: #{_controller_forward_impl.1} parent=0 // pred_region
    _
  $region25: #{_controller_forward_impl.1} parent=0 // pred_fallthru
    _

</llo_original>
